<compile_context>
chip_gen: v5e
topology: v5e:2x2
jax: 0.10.0
libtpu: 0.0.40
codegen_flags: <defaults>
</compile_context>

<pallas_src>
import math
from functools import partial

import jax
import jax.numpy as jnp
from jax.experimental import pallas as pl
from jax.experimental.pallas import tpu as pltpu

BN_EPS = 1e-5       # nn.BatchNorm1d default eps
NORM_EPS = 1e-12    # F.normalize default eps


# ----------------------------------------------------------------------------- kernel

def _simclr_fused_kernel(x_ref, wenc_ref,
                         w1_ref, g1_ref, b1_ref,
                         w2_ref, g2_ref, b2_ref,
                         w3_ref, b3_ref,
                         loss_ref, e_ref, z_ref,
                         *, inv_temp, batch):
    """Fused: encoder matmul -> projector (per-view BN) -> NT-Xent loss, both views."""

    def bn_per_view(h, gamma=None, beta=None):
        # training-mode BatchNorm1d with biased batch statistics, computed PER VIEW
        # (each B-sized half of the stacked [2B, F] activations), matching two
        # independent projector calls in the PyTorch module.
        feat = h.shape[-1]
        hv = h.reshape(2, batch, feat)                         # sublane-aligned split
        mean = jnp.mean(hv, axis=1, keepdims=True)             # [2, 1, F]
        centered = hv - mean                                   # computed once, reused
        var = jnp.mean(centered * centered, axis=1, keepdims=True)
        inv_std = jax.lax.rsqrt(var + BN_EPS)                  # EUP, [2, 1, F]
        if gamma is not None:
            # fold the affine into the small per-view scale: one fewer [2B,F] multiply
            hn = centered * (inv_std * gamma) + beta
        else:
            hn = centered * inv_std
        return hn.reshape(2 * batch, feat)

    # ---- encoder (linear stand-in): [2B, K] @ [K, F]
    e = jnp.dot(x_ref[...], wenc_ref[...], preferred_element_type=jnp.float32)
    e_ref[...] = e

    # ---- projector: Linear -> BN -> ReLU -> Linear -> BN -> ReLU -> Linear(+bias) -> BN(no affine)
    h = jnp.dot(e, w1_ref[...], preferred_element_type=jnp.float32)
    h = jnp.maximum(bn_per_view(h, g1_ref[...], b1_ref[...]), 0.0)
    h = jnp.dot(h, w2_ref[...], preferred_element_type=jnp.float32)
    h = jnp.maximum(bn_per_view(h, g2_ref[...], b2_ref[...]), 0.0)
    h = jnp.dot(h, w3_ref[...], preferred_element_type=jnp.float32) + b3_ref[...]
    z = bn_per_view(h)                                # final BatchNorm1d(affine=False)
    z_ref[...] = z

    # ---- NT-Xent loss
    # F.normalize(dim=-1): x / max(||x||, eps) == x * rsqrt(max(||x||^2, eps^2))
    norm_sq = jnp.sum(z * z, axis=-1, keepdims=True)
    zn = z * jax.lax.rsqrt(jnp.maximum(norm_sq, NORM_EPS * NORM_EPS))   # [2B, P]

    # sim[i, j] = <zn_i, zn_j>; contract last dims of both operands -> no transpose copy
    sim = jax.lax.dot_general(zn, zn, (((1,), (1,)), ((), ())),
                              preferred_element_type=jnp.float32)
    exp_sim = jnp.exp(sim * inv_temp)
    # rows are unit-norm => diag(sim) == 1 => diag(exp_sim) == exp(1/T): subtract it
    # instead of building an off-diagonal mask. (Safe: entries bounded by exp(1/T).)
    row_sum = jnp.sum(exp_sim, axis=-1, keepdims=True) - math.exp(inv_temp)   # [2B, 1]

    # positive-pair similarity <z1n_i, z2n_i>; identical for both halves, so
    # mean over 2B rows of (log(row_sum) - pos/T) == mean(log(row_sum)) - mean_B(pos)/T
    znv = zn.reshape(2, batch, zn.shape[-1])
    pos = jnp.sum(znv[0] * znv[1], axis=-1, keepdims=True)                    # [B, 1]

    loss_ref[0] = jnp.mean(jnp.log(row_sum)) - jnp.mean(pos) * inv_temp


def simclr_forward(x_views_list, params, temperature=0.5):
    """Mirrors SimCLR.forward: returns (loss, [z1, z2], [e1, e2])."""
    x1, x2 = x_views_list[0], x_views_list[1]
    B = x1.shape[0]
    # NCHW -> [B, C*H*W] features-last, both views stacked to [2B, K]
    x = jnp.concatenate(
        [x1.reshape(B, -1), x2.reshape(B, -1)], axis=0).astype(jnp.float32)

    F = params["w_enc"].shape[1]
    P = params["w3"].shape[1]

    vmem = lambda: pl.BlockSpec(memory_space=pltpu.MemorySpace.VMEM)

    loss, e, z = pl.pallas_call(
        partial(_simclr_fused_kernel, inv_temp=1.0 / float(temperature), batch=B),
        out_shape=(
            jax.ShapeDtypeStruct((1,), jnp.float32),        # loss
            jax.ShapeDtypeStruct((2 * B, F), jnp.float32),  # stacked encoder feats
            jax.ShapeDtypeStruct((2 * B, P), jnp.float32),  # stacked projections
        ),
        in_specs=[vmem() for _ in range(10)],
        out_specs=(
            pl.BlockSpec(memory_space=pltpu.MemorySpace.SMEM),
            vmem(),
            vmem(),
        ),
        compiler_params=pltpu.CompilerParams(vmem_limit_bytes=64 << 20),
    )(x, params["w_enc"],
      params["w1"], params["g1"], params["b1"],
      params["w2"], params["g2"], params["b2"],
      params["w3"], params["b3"])

    e1, e2 = e[:B], e[B:]
    z1, z2 = z[:B], z[B:]
    return loss[0], [z1, z2], [e1, e2]


# ----------------------------------------------------------------------------- params

def init_params(key, in_features, dim_backbone_features, dim_proj):
    ks = jax.random.split(key, 6)
    F, P = dim_backbone_features, dim_proj
    scale = 0.05
    return {
        "w_enc": scale * jax.random.normal(ks[0], (in_features, F), jnp.float32),
        "w1": scale * jax.random.normal(ks[1], (F, F), jnp.float32),
        "g1": jnp.ones((1, F), jnp.float32),
        "b1": jnp.zeros((1, F), jnp.float32),
        "w2": scale * jax.random.normal(ks[2], (F, F), jnp.float32),
        "g2": jnp.ones((1, F), jnp.float32),
        "b2": jnp.zeros((1, F), jnp.float32),
        "w3": scale * jax.random.normal(ks[3], (F, P), jnp.float32),
        "b3": scale * jax.random.normal(ks[4], (1, P), jnp.float32),
    }


# ----------------------------------------------------------------------------- reference (plain JAX)

def _ref_forward(x_views_list, p, temperature=0.5):
    def bn(h, g=None, b=None):
        m = jnp.mean(h, axis=0, keepdims=True)
        v = jnp.mean((h - m) ** 2, axis=0, keepdims=True)
        hn = (h - m) / jnp.sqrt(v + BN_EPS)
        return hn * g + b if g is not None else hn

    def proj(e):
        h = jnp.maximum(bn(e @ p["w1"], p["g1"], p["b1"]), 0.0)
        h = jnp.maximum(bn(h @ p["w2"], p["g2"], p["b2"]), 0.0)
        return bn(h @ p["w3"] + p["b3"])

    x1, x2 = x_views_list
    B = x1.shape[0]
    e1 = x1.reshape(B, -1) @ p["w_enc"]
    e2 = x2.reshape(B, -1) @ p["w_enc"]
    z1, z2 = proj(e1), proj(e2)
    z1n = z1 / jnp.maximum(jnp.linalg.norm(z1, axis=-1, keepdims=True), NORM_EPS)
    z2n = z2 / jnp.maximum(jnp.linalg.norm(z2, axis=-1, keepdims=True), NORM_EPS)
    out = jnp.concatenate([z1n, z2n], axis=0)
    sim = jnp.exp(out @ out.T / temperature)
    n = 2 * B
    sim = sim * (1.0 - jnp.eye(n))
    pos = jnp.exp(jnp.sum(z1n * z2n, axis=-1) / temperature)
    pos = jnp.concatenate([pos, pos], axis=0)
    return jnp.mean(-jnp.log(pos / jnp.sum(sim, axis=-1))), [z1, z2], [e1, e2]


# ----------------------------------------------------------------------------- main

if __name__ == "__main__":
    key = jax.random.PRNGKey(0)
    B, C, H, W = 8, 4, 16, 16
    dim_backbone_features = 128   # lane-dense (multiple of 128)
    dim_proj = 128                # lane-dense (multiple of 128)
    temperature = 0.5

    k_x1, k_x2, k_p = jax.random.split(key, 3)
    x1 = jax.random.normal(k_x1, (B, C, H, W), jnp.float32)   # NCHW, like PyTorch
    x2 = jax.random.normal(k_x2, (B, C, H, W), jnp.float32)

    params = init_params(k_p, C * H * W, dim_backbone_features, dim_proj)

    loss, (z1, z2), (e1, e2) = simclr_forward([x1, x2], params, temperature)
    jax.block_until_ready((loss, z1, z2, e1, e2))

    # sanity check against a plain-JAX reference
    loss_ref, (z1_ref, z2_ref), (e1_ref, e2_ref) = _ref_forward([x1, x2], params, temperature)
    assert jnp.allclose(loss, loss_ref, rtol=1e-3, atol=1e-3), (loss, loss_ref)
    assert jnp.allclose(z1, z1_ref, rtol=1e-3, atol=1e-3)
    assert jnp.allclose(z2, z2_ref, rtol=1e-3, atol=1e-3)
    assert jnp.allclose(e1, e1_ref, rtol=1e-3, atol=1e-3)
    assert jnp.allclose(e2, e2_ref, rtol=1e-3, atol=1e-3)
    assert loss.shape == () and z1.shape == (B, dim_proj) and e1.shape == (B, dim_backbone_features)

    print("KERNEL_OK")
</pallas_src>

<mosaic_0001>
module attributes {stable_mosaic.version = 11 : i64} {
  func.func @_simclr_fused_kernel(%arg0: memref<16x1024xf32, #tpu.memory_space<vmem>>, %arg1: memref<1024x128xf32, #tpu.memory_space<vmem>>, %arg2: memref<128x128xf32, #tpu.memory_space<vmem>>, %arg3: memref<1x128xf32, #tpu.memory_space<vmem>>, %arg4: memref<1x128xf32, #tpu.memory_space<vmem>>, %arg5: memref<128x128xf32, #tpu.memory_space<vmem>>, %arg6: memref<1x128xf32, #tpu.memory_space<vmem>>, %arg7: memref<1x128xf32, #tpu.memory_space<vmem>>, %arg8: memref<128x128xf32, #tpu.memory_space<vmem>>, %arg9: memref<1x128xf32, #tpu.memory_space<vmem>>, %arg10: memref<1xf32, #tpu.memory_space<smem>>, %arg11: memref<16x128xf32, #tpu.memory_space<vmem>>, %arg12: memref<16x128xf32, #tpu.memory_space<vmem>>) attributes {dimension_semantics = [], scalar_prefetch = 0 : i64, scratch_operands = 0 : i64, tpu.core_type = #tpu.core_type<tc>} {
    %c0 = arith.constant 0 : index
    %c0_0 = arith.constant 0 : index
    %0 = vector.load %arg0[%c0, %c0_0] : memref<16x1024xf32, #tpu.memory_space<vmem>>, vector<16x1024xf32>
    %c0_1 = arith.constant 0 : index
    %c0_2 = arith.constant 0 : index
    %1 = vector.load %arg1[%c0_1, %c0_2] : memref<1024x128xf32, #tpu.memory_space<vmem>>, vector<1024x128xf32>
    %cst = arith.constant dense<0.000000e+00> : vector<16x128xf32>
    %2 = tpu.matmul %0, %1, %cst {dimension_numbers = #tpu.dot_dimension_numbers<[1], [0], [0], [1], [0, 0, 1, 1], [], []>} : vector<16x1024xf32>, vector<1024x128xf32>, vector<16x128xf32> -> vector<16x128xf32>
    %c0_3 = arith.constant 0 : index
    %c0_4 = arith.constant 0 : index
    %3 = vector.load %arg11[%c0_3, %c0_4] : memref<16x128xf32, #tpu.memory_space<vmem>>, vector<16x128xf32>
    tpu.vector_store %arg11[%c0_3, %c0_4], %2 {strides = array<i32>} : memref<16x128xf32, #tpu.memory_space<vmem>>, vector<16x128xf32>,
    %c0_5 = arith.constant 0 : index
    %c0_6 = arith.constant 0 : index
    %4 = vector.load %arg2[%c0_5, %c0_6] : memref<128x128xf32, #tpu.memory_space<vmem>>, vector<128x128xf32>
    %cst_7 = arith.constant dense<0.000000e+00> : vector<16x128xf32>
    %5 = tpu.matmul %2, %4, %cst_7 {dimension_numbers = #tpu.dot_dimension_numbers<[1], [0], [0], [1], [0, 0, 1, 1], [], []>} : vector<16x128xf32>, vector<128x128xf32>, vector<16x128xf32> -> vector<16x128xf32>
    %c0_8 = arith.constant 0 : index
    %c0_9 = arith.constant 0 : index
    %6 = vector.load %arg3[%c0_8, %c0_9] : memref<1x128xf32, #tpu.memory_space<vmem>>, vector<1x128xf32>
    %c0_10 = arith.constant 0 : index
    %c0_11 = arith.constant 0 : index
    %7 = vector.load %arg4[%c0_10, %c0_11] : memref<1x128xf32, #tpu.memory_space<vmem>>, vector<1x128xf32>
    %8 = vector.shape_cast %5 : vector<16x128xf32> to vector<2x8x128xf32>
    %cst_12 = arith.constant dense<0.000000e+00> : vector<2x128xf32>
    %9 = vector.multi_reduction <add>, %8, %cst_12 [1] : vector<2x8x128xf32> to vector<2x128xf32>
    %10 = vector.shape_cast %9 : vector<2x128xf32> to vector<2x1x128xf32>
    %cst_13 = arith.constant 8.000000e+00 : f32
    %11 = vector.broadcast %cst_13 : f32 to vector<2x1x128xf32>
    %12 = arith.divf %10, %11 : vector<2x1x128xf32>
    %13 = vector.broadcast %12 : vector<2x1x128xf32> to vector<2x8x128xf32>
    %14 = arith.subf %8, %13 : vector<2x8x128xf32>
    %15 = arith.mulf %14, %14 : vector<2x8x128xf32>
    %cst_14 = arith.constant dense<0.000000e+00> : vector<2x128xf32>
    %16 = vector.multi_reduction <add>, %15, %cst_14 [1] : vector<2x8x128xf32> to vector<2x128xf32>
    %17 = vector.shape_cast %16 : vector<2x128xf32> to vector<2x1x128xf32>
    %cst_15 = arith.constant 8.000000e+00 : f32
    %18 = vector.broadcast %cst_15 : f32 to vector<2x1x128xf32>
    %19 = arith.divf %17, %18 : vector<2x1x128xf32>
    %cst_16 = arith.constant 9.99999974E-6 : f32
    %20 = vector.broadcast %cst_16 : f32 to vector<2x1x128xf32>
    %21 = arith.addf %19, %20 : vector<2x1x128xf32>
    %22 = math.rsqrt %21 : vector<2x1x128xf32>
    %23 = vector.shape_cast %6 : vector<1x128xf32> to vector<1x1x128xf32>
    %24 = vector.broadcast %23 : vector<1x1x128xf32> to vector<2x1x128xf32>
    %25 = arith.mulf %22, %24 : vector<2x1x128xf32>
    %26 = vector.broadcast %25 : vector<2x1x128xf32> to vector<2x8x128xf32>
    %27 = arith.mulf %14, %26 : vector<2x8x128xf32>
    %28 = vector.shape_cast %7 : vector<1x128xf32> to vector<1x1x128xf32>
    %29 = vector.broadcast %28 : vector<1x1x128xf32> to vector<2x8x128xf32>
    %30 = arith.addf %27, %29 : vector<2x8x128xf32>
    %31 = vector.shape_cast %30 : vector<2x8x128xf32> to vector<16x128xf32>
    %cst_17 = arith.constant 0.000000e+00 : f32
    %32 = vector.broadcast %cst_17 : f32 to vector<16x128xf32>
    %33 = arith.maximumf %31, %32 : vector<16x128xf32>
    %c0_18 = arith.constant 0 : index
    %c0_19 = arith.constant 0 : index
    %34 = vector.load %arg5[%c0_18, %c0_19] : memref<128x128xf32, #tpu.memory_space<vmem>>, vector<128x128xf32>
    %cst_20 = arith.constant dense<0.000000e+00> : vector<16x128xf32>
    %35 = tpu.matmul %33, %34, %cst_20 {dimension_numbers = #tpu.dot_dimension_numbers<[1], [0], [0], [1], [0, 0, 1, 1], [], []>} : vector<16x128xf32>, vector<128x128xf32>, vector<16x128xf32> -> vector<16x128xf32>
    %c0_21 = arith.constant 0 : index
    %c0_22 = arith.constant 0 : index
    %36 = vector.load %arg6[%c0_21, %c0_22] : memref<1x128xf32, #tpu.memory_space<vmem>>, vector<1x128xf32>
    %c0_23 = arith.constant 0 : index
    %c0_24 = arith.constant 0 : index
    %37 = vector.load %arg7[%c0_23, %c0_24] : memref<1x128xf32, #tpu.memory_space<vmem>>, vector<1x128xf32>
    %38 = vector.shape_cast %35 : vector<16x128xf32> to vector<2x8x128xf32>
    %cst_25 = arith.constant dense<0.000000e+00> : vector<2x128xf32>
    %39 = vector.multi_reduction <add>, %38, %cst_25 [1] : vector<2x8x128xf32> to vector<2x128xf32>
    %40 = vector.shape_cast %39 : vector<2x128xf32> to vector<2x1x128xf32>
    %cst_26 = arith.constant 8.000000e+00 : f32
    %41 = vector.broadcast %cst_26 : f32 to vector<2x1x128xf32>
    %42 = arith.divf %40, %41 : vector<2x1x128xf32>
    %43 = vector.broadcast %42 : vector<2x1x128xf32> to vector<2x8x128xf32>
    %44 = arith.subf %38, %43 : vector<2x8x128xf32>
    %45 = arith.mulf %44, %44 : vector<2x8x128xf32>
    %cst_27 = arith.constant dense<0.000000e+00> : vector<2x128xf32>
    %46 = vector.multi_reduction <add>, %45, %cst_27 [1] : vector<2x8x128xf32> to vector<2x128xf32>
    %47 = vector.shape_cast %46 : vector<2x128xf32> to vector<2x1x128xf32>
    %cst_28 = arith.constant 8.000000e+00 : f32
    %48 = vector.broadcast %cst_28 : f32 to vector<2x1x128xf32>
    %49 = arith.divf %47, %48 : vector<2x1x128xf32>
    %cst_29 = arith.constant 9.99999974E-6 : f32
    %50 = vector.broadcast %cst_29 : f32 to vector<2x1x128xf32>
    %51 = arith.addf %49, %50 : vector<2x1x128xf32>
    %52 = math.rsqrt %51 : vector<2x1x128xf32>
    %53 = vector.shape_cast %36 : vector<1x128xf32> to vector<1x1x128xf32>
    %54 = vector.broadcast %53 : vector<1x1x128xf32> to vector<2x1x128xf32>
    %55 = arith.mulf %52, %54 : vector<2x1x128xf32>
    %56 = vector.broadcast %55 : vector<2x1x128xf32> to vector<2x8x128xf32>
    %57 = arith.mulf %44, %56 : vector<2x8x128xf32>
    %58 = vector.shape_cast %37 : vector<1x128xf32> to vector<1x1x128xf32>
    %59 = vector.broadcast %58 : vector<1x1x128xf32> to vector<2x8x128xf32>
    %60 = arith.addf %57, %59 : vector<2x8x128xf32>
    %61 = vector.shape_cast %60 : vector<2x8x128xf32> to vector<16x128xf32>
    %cst_30 = arith.constant 0.000000e+00 : f32
    %62 = vector.broadcast %cst_30 : f32 to vector<16x128xf32>
    %63 = arith.maximumf %61, %62 : vector<16x128xf32>
    %c0_31 = arith.constant 0 : index
    %c0_32 = arith.constant 0 : index
    %64 = vector.load %arg8[%c0_31, %c0_32] : memref<128x128xf32, #tpu.memory_space<vmem>>, vector<128x128xf32>
    %cst_33 = arith.constant dense<0.000000e+00> : vector<16x128xf32>
    %65 = tpu.matmul %63, %64, %cst_33 {dimension_numbers = #tpu.dot_dimension_numbers<[1], [0], [0], [1], [0, 0, 1, 1], [], []>} : vector<16x128xf32>, vector<128x128xf32>, vector<16x128xf32> -> vector<16x128xf32>
    %c0_34 = arith.constant 0 : index
    %c0_35 = arith.constant 0 : index
    %66 = vector.load %arg9[%c0_34, %c0_35] : memref<1x128xf32, #tpu.memory_space<vmem>>, vector<1x128xf32>
    %67 = vector.broadcast %66 : vector<1x128xf32> to vector<16x128xf32>
    %68 = arith.addf %65, %67 : vector<16x128xf32>
    %69 = vector.shape_cast %68 : vector<16x128xf32> to vector<2x8x128xf32>
    %cst_36 = arith.constant dense<0.000000e+00> : vector<2x128xf32>
    %70 = vector.multi_reduction <add>, %69, %cst_36 [1] : vector<2x8x128xf32> to vector<2x128xf32>
    %71 = vector.shape_cast %70 : vector<2x128xf32> to vector<2x1x128xf32>
    %cst_37 = arith.constant 8.000000e+00 : f32
    %72 = vector.broadcast %cst_37 : f32 to vector<2x1x128xf32>
    %73 = arith.divf %71, %72 : vector<2x1x128xf32>
    %74 = vector.broadcast %73 : vector<2x1x128xf32> to vector<2x8x128xf32>
    %75 = arith.subf %69, %74 : vector<2x8x128xf32>
    %76 = arith.mulf %75, %75 : vector<2x8x128xf32>
    %cst_38 = arith.constant dense<0.000000e+00> : vector<2x128xf32>
    %77 = vector.multi_reduction <add>, %76, %cst_38 [1] : vector<2x8x128xf32> to vector<2x128xf32>
    %78 = vector.shape_cast %77 : vector<2x128xf32> to vector<2x1x128xf32>
    %cst_39 = arith.constant 8.000000e+00 : f32
    %79 = vector.broadcast %cst_39 : f32 to vector<2x1x128xf32>
    %80 = arith.divf %78, %79 : vector<2x1x128xf32>
    %cst_40 = arith.constant 9.99999974E-6 : f32
    %81 = vector.broadcast %cst_40 : f32 to vector<2x1x128xf32>
    %82 = arith.addf %80, %81 : vector<2x1x128xf32>
    %83 = math.rsqrt %82 : vector<2x1x128xf32>
    %84 = vector.broadcast %83 : vector<2x1x128xf32> to vector<2x8x128xf32>
    %85 = arith.mulf %75, %84 : vector<2x8x128xf32>
    %86 = vector.shape_cast %85 : vector<2x8x128xf32> to vector<16x128xf32>
    %c0_41 = arith.constant 0 : index
    %c0_42 = arith.constant 0 : index
    %87 = vector.load %arg12[%c0_41, %c0_42] : memref<16x128xf32, #tpu.memory_space<vmem>>, vector<16x128xf32>
    tpu.vector_store %arg12[%c0_41, %c0_42], %86 {strides = array<i32>} : memref<16x128xf32, #tpu.memory_space<vmem>>, vector<16x128xf32>,
    %88 = arith.mulf %86, %86 : vector<16x128xf32>
    %cst_43 = arith.constant dense<0.000000e+00> : vector<16xf32>
    %89 = vector.multi_reduction <add>, %88, %cst_43 [1] : vector<16x128xf32> to vector<16xf32>
    %90 = vector.shape_cast %89 : vector<16xf32> to vector<16x1xf32>
    %cst_44 = arith.constant 1.000000e-24 : f32
    %91 = vector.broadcast %cst_44 : f32 to vector<16x1xf32>
    %92 = arith.maximumf %90, %91 : vector<16x1xf32>
    %93 = math.rsqrt %92 : vector<16x1xf32>
    %94 = vector.broadcast %93 : vector<16x1xf32> to vector<16x128xf32>
    %95 = arith.mulf %86, %94 : vector<16x128xf32>
    %cst_45 = arith.constant dense<0.000000e+00> : vector<16x16xf32>
    %96 = tpu.matmul %95, %95, %cst_45 {dimension_numbers = #tpu.dot_dimension_numbers<[1], [1], [0], [0], [0, 0, 1, 0], [], []>} : vector<16x128xf32>, vector<16x128xf32>, vector<16x16xf32> -> vector<16x16xf32>
    %cst_46 = arith.constant 2.000000e+00 : f32
    %97 = vector.broadcast %cst_46 : f32 to vector<16x16xf32>
    %98 = arith.mulf %96, %97 : vector<16x16xf32>
    %99 = math.exp %98 : vector<16x16xf32>
    %cst_47 = arith.constant dense<0.000000e+00> : vector<16xf32>
    %100 = vector.multi_reduction <add>, %99, %cst_47 [1] : vector<16x16xf32> to vector<16xf32>
    %101 = vector.shape_cast %100 : vector<16xf32> to vector<16x1xf32>
    %cst_48 = arith.constant 7.3890562 : f32
    %102 = vector.broadcast %cst_48 : f32 to vector<16x1xf32>
    %103 = arith.subf %101, %102 : vector<16x1xf32>
    %104 = vector.shape_cast %95 : vector<16x128xf32> to vector<2x8x128xf32>
    %105 = vector.extract_strided_slice %104 {offsets = [0, 0, 0], sizes = [1, 8, 128], strides = [1, 1, 1]} : vector<2x8x128xf32> to vector<1x8x128xf32>
    %106 = vector.shape_cast %105 : vector<1x8x128xf32> to vector<8x128xf32>
    %107 = vector.extract_strided_slice %104 {offsets = [1, 0, 0], sizes = [1, 8, 128], strides = [1, 1, 1]} : vector<2x8x128xf32> to vector<1x8x128xf32>
    %108 = vector.shape_cast %107 : vector<1x8x128xf32> to vector<8x128xf32>
    %109 = arith.mulf %106, %108 : vector<8x128xf32>
    %cst_49 = arith.constant dense<0.000000e+00> : vector<8xf32>
    %110 = vector.multi_reduction <add>, %109, %cst_49 [1] : vector<8x128xf32> to vector<8xf32>
    %111 = vector.shape_cast %110 : vector<8xf32> to vector<8x1xf32>
    %112 = math.log %103 : vector<16x1xf32>
    %113 = vector.shape_cast %112 : vector<16x1xf32> to vector<1x16x1xf32>
    %cst_50 = arith.constant dense<0.000000e+00> : vector<1xf32>
    %114 = vector.multi_reduction <add>, %113, %cst_50 [1, 2] : vector<1x16x1xf32> to vector<1xf32>
    %115 = vector.shape_cast %114 : vector<1xf32> to vector<1x1x1xf32>
    %116 = vector.extract %115[0, 0, 0] : f32 from vector<1x1x1xf32>
    %cst_51 = arith.constant 1.600000e+01 : f32
    %117 = arith.divf %116, %cst_51 : f32
    %118 = vector.shape_cast %111 : vector<8x1xf32> to vector<1x8x1xf32>
    %cst_52 = arith.constant dense<0.000000e+00> : vector<1xf32>
    %119 = vector.multi_reduction <add>, %118, %cst_52 [1, 2] : vector<1x8x1xf32> to vector<1xf32>
    %120 = vector.shape_cast %119 : vector<1xf32> to vector<1x1x1xf32>
    %121 = vector.extract %120[0, 0, 0] : f32 from vector<1x1x1xf32>
    %cst_53 = arith.constant 8.000000e+00 : f32
    %122 = arith.divf %121, %cst_53 : f32
    %cst_54 = arith.constant 2.000000e+00 : f32
    %123 = arith.mulf %122, %cst_54 : f32
    %124 = arith.subf %117, %123 : f32
    %c0_55 = arith.constant 0 : index
    %125 = memref.load %arg10[%c0_55] : memref<1xf32, #tpu.memory_space<smem>>
    memref.store %124, %arg10[%c0_55] : memref<1xf32, #tpu.memory_space<smem>>
    return
  }
}

</mosaic_0001>

<llo_original>
// kernel: tpu_custom_call.1
$region0: #{tpu_custom_call.1}
  #allocation0 [shape = 'u32[]', space=smem, size = 0x4, offset = 0x4, fixed_abs, tag = 'smem constant byte address 0x4 - core index']
  #allocation1 [shape = 'u32[72,128]{1,0:T(1,128)}', space=vmem, size = 0x9000, scoped, tag = 'internal scratch']
  %s0 = inlined_call_operand.hbm [shape: f32[16,1024], index: 0, kind: input, shape index: {}]
  %s1 = inlined_call_operand.hbm [shape: f32[1024,128], index: 1, kind: input, shape index: {}]
  %s2 = inlined_call_operand.hbm [shape: f32[128,128], index: 2, kind: input, shape index: {}]
  %s3 = inlined_call_operand.vmem [shape: f32[1,128], index: 3, kind: input, shape index: {}]
  %s4 = inlined_call_operand.vmem [shape: f32[1,128], index: 4, kind: input, shape index: {}]
  %s5 = inlined_call_operand.hbm [shape: f32[128,128], index: 5, kind: input, shape index: {}]
  %s6 = inlined_call_operand.vmem [shape: f32[1,128], index: 6, kind: input, shape index: {}]
  %s7 = inlined_call_operand.vmem [shape: f32[1,128], index: 7, kind: input, shape index: {}]
  %s8 = inlined_call_operand.hbm [shape: f32[128,128], index: 8, kind: input, shape index: {}]
  %s9 = inlined_call_operand.vmem [shape: f32[1,128], index: 9, kind: input, shape index: {}]
  %s10 = inlined_call_operand.hbm [shape: f32[1], index: 10, kind: output, shape index: {0}]
  %s11 = inlined_call_operand.hbm [shape: f32[16,128], index: 11, kind: output, shape index: {1}]
  %s12 = inlined_call_operand.hbm [shape: f32[16,128], index: 12, kind: output, shape index: {2}]
  %13 = xla_tuple %s10, %s11, %s12
  %s14 = sld [smem:[#allocation0]]
  $region86: #{tpu_custom_call.1} parent=0
    _
  %s16 = ssub.s32 1, %s14
  %s17 = scalar_select 0, %s16, %s14
  $region1: #{tpu_custom_call.1} parent=0
    #allocation2 [shape = 'u8[65536]{0}', space=vmem, size = 0x10000, scoped, tag = 'input window, operand 0, single buffered']
    #allocation3 [shape = 's32[1]{0}', space=sflag, size = 0x4, scoped, tag = 'scoped memory for tpu_custom_call.1']
    #allocation4 [shape = 's32[1]{0}', space=sflag, size = 0x4, scoped, tag = 'scoped memory for tpu_custom_call.1']
    #allocation5 [shape = 's32[1]{0}', space=sflag, size = 0x4, scoped, tag = 'scoped memory for tpu_custom_call.1']
    #allocation6 [shape = 'u8[524288]{0}', space=vmem, size = 0x80000, scoped, tag = 'input window, operand 1, single buffered']
    #allocation7 [shape = 's32[1]{0}', space=sflag, size = 0x4, scoped, tag = 'scoped memory for tpu_custom_call.1']
    #allocation8 [shape = 'u8[65536]{0}', space=vmem, size = 0x10000, scoped, tag = 'input window, operand 2, single buffered']
    #allocation9 [shape = 'u8[65536]{0}', space=vmem, size = 0x10000, scoped, tag = 'input window, operand 5, single buffered']
    #allocation10 [shape = 's32[1]{0}', space=sflag, size = 0x4, scoped, tag = 'scoped memory for tpu_custom_call.1']
    #allocation11 [shape = 'u8[65536]{0}', space=vmem, size = 0x10000, scoped, tag = 'input window, operand 8, single buffered']
    #allocation12 [shape = 'u8[512]{0}', space=smem, size = 0x200, scoped, tag = 'output window, operand 0, single buffered']
    #allocation13 [shape = 'u8[8192]{0}', space=vmem, size = 0x2000, scoped, tag = 'output window, operand 1, single buffered']
    #allocation14 [shape = 'u8[8192]{0}', space=vmem, size = 0x2000, scoped, tag = 'output window, operand 2, single buffered']
    #allocation15 [shape = 's32[1]{0}', space=sflag, size = 0x4, scoped, tag = 'scoped memory for tpu_custom_call.1']
    %18 = vsyncpa [#allocation3], 0
    %19 = vsyncpa [#allocation7], 0
    %20 = vsyncpa [#allocation10], 0
    %21 = vsyncpa [#allocation5], 0
    %22 = vsyncpa [#allocation4], 0
    %23 = vsyncpa [#allocation15], 0
    // Predicated region
    $region2: #{tpu_custom_call.1} parent=1 // pred_check
      _
    $region3: #{tpu_custom_call.1} parent=1 // pred_check_branch
      %25 = sbr.rel (0) target = $region5
    $region4: #{tpu_custom_call.1} parent=1 // pred_region
      %27 = vsyncadd [#allocation3], 0
      %s28 = sshll.u32 %s0, 4
      %s29 = int_to_ptr.hbm [resolvable:$true] %s28
      %s30 = sshll.u32 [#allocation2], 4
      %s31 = int_to_ptr.vmem [resolvable:$true] %s30
      %36 = dma.hbm_to_vmem [thread:$0]  %s29, 2048, %s31, [#allocation3], 1024, 1024, 64
    $region5: #{tpu_custom_call.1} parent=1 // pred_fallthru
      _
    // Predicated region
    $region6: #{tpu_custom_call.1} parent=1 // pred_check
      _
    $region7: #{tpu_custom_call.1} parent=1 // pred_check_branch
      %38 = sbr.rel (0) target = $region9
    $region8: #{tpu_custom_call.1} parent=1 // pred_region
      %40 = vsyncadd [#allocation7], 0
      %s41 = sshll.u32 %s1, 4
      %s42 = int_to_ptr.hbm [resolvable:$true] %s41
      %s43 = sshll.u32 [#allocation6], 4
      %s44 = int_to_ptr.vmem [resolvable:$true] %s43
      %49 = dma.hbm_to_vmem [thread:$0]  %s42, 16384, %s44, [#allocation7], 128, 128, 8
    $region9: #{tpu_custom_call.1} parent=1 // pred_fallthru
      _
    // Predicated region
    $region10: #{tpu_custom_call.1} parent=1 // pred_check
      _
    $region11: #{tpu_custom_call.1} parent=1 // pred_check_branch
      %51 = sbr.rel (0) target = $region13
    $region12: #{tpu_custom_call.1} parent=1 // pred_region
      %53 = vsyncadd [#allocation7], 0
      %s54 = sshll.u32 %s2, 4
      %s55 = int_to_ptr.hbm [resolvable:$true] %s54
      %s56 = sshll.u32 [#allocation8], 4
      %s57 = int_to_ptr.vmem [resolvable:$true] %s56
      %62 = dma.hbm_to_vmem [thread:$0]  %s55, 2048, %s57, [#allocation7], 128, 128, 8
    $region13: #{tpu_custom_call.1} parent=1 // pred_fallthru
      _
    // Predicated region
    $region14: #{tpu_custom_call.1} parent=1 // pred_check
      _
    $region15: #{tpu_custom_call.1} parent=1 // pred_check_branch
      %64 = sbr.rel (0) target = $region17
    $region16: #{tpu_custom_call.1} parent=1 // pred_region
      _
    $region17: #{tpu_custom_call.1} parent=1 // pred_fallthru
      _
    // Predicated region
    $region18: #{tpu_custom_call.1} parent=1 // pred_check
      _
    $region19: #{tpu_custom_call.1} parent=1 // pred_check_branch
      %66 = sbr.rel (0) target = $region21
    $region20: #{tpu_custom_call.1} parent=1 // pred_region
      _
    $region21: #{tpu_custom_call.1} parent=1 // pred_fallthru
      _
    // Predicated region
    $region22: #{tpu_custom_call.1} parent=1 // pred_check
      _
    $region23: #{tpu_custom_call.1} parent=1 // pred_check_branch
      %68 = sbr.rel (0) target = $region25
    $region24: #{tpu_custom_call.1} parent=1 // pred_region
      %70 = vsyncadd [#allocation10], 0
      %s71 = sshll.u32 %s5, 4
      %s72 = int_to_ptr.hbm [resolvable:$true] %s71
      %s73 = sshll.u32 [#allocation9], 4
      %s74 = int_to_ptr.vmem [resolvable:$true] %s73
      %79 = dma.hbm_to_vmem [thread:$0]  %s72, 2048, %s74, [#allocation10], 128, 128, 8
    $region25: #{tpu_custom_call.1} parent=1 // pred_fallthru
      _
    // Predicated region
    $region26: #{tpu_custom_call.1} parent=1 // pred_check
      _
    $region27: #{tpu_custom_call.1} parent=1 // pred_check_branch
      %81 = sbr.rel (0) target = $region29
    $region28: #{tpu_custom_call.1} parent=1 // pred_region
      _
    $region29: #{tpu_custom_call.1} parent=1 // pred_fallthru
      _
    // Predicated region
    $region30: #{tpu_custom_call.1} parent=1 // pred_check
      _
    $region31: #{tpu_custom_call.1} parent=1 // pred_check_branch
      %83 = sbr.rel (0) target = $region33
    $region32: #{tpu_custom_call.1} parent=1 // pred_region
      _
    $region33: #{tpu_custom_call.1} parent=1 // pred_fallthru
      _
    // Predicated region
    $region34: #{tpu_custom_call.1} parent=1 // pred_check
      _
    $region35: #{tpu_custom_call.1} parent=1 // pred_check_branch
      %85 = sbr.rel (0) target = $region37
    $region36: #{tpu_custom_call.1} parent=1 // pred_region
      %87 = vsyncadd [#allocation10], 0
      %s88 = sshll.u32 %s8, 4
      %s89 = int_to_ptr.hbm [resolvable:$true] %s88
      %s90 = sshll.u32 [#allocation11], 4
      %s91 = int_to_ptr.vmem [resolvable:$true] %s90
      %96 = dma.hbm_to_vmem [thread:$0]  %s89, 2048, %s91, [#allocation10], 128, 128, 8
    $region37: #{tpu_custom_call.1} parent=1 // pred_fallthru
      _
    // Predicated region
    $region38: #{tpu_custom_call.1} parent=1 // pred_check
      _
    $region39: #{tpu_custom_call.1} parent=1 // pred_check_branch
      %98 = sbr.rel (0) target = $region41
    $region40: #{tpu_custom_call.1} parent=1 // pred_region
      _
    $region41: #{tpu_custom_call.1} parent=1 // pred_fallthru
      _
    // Predicated region
    $region42: #{tpu_custom_call.1} parent=1 // pred_check
      _
    $region43: #{tpu_custom_call.1} parent=1 // pred_check_branch
      %100 = sbr.rel (0) target = $region45
    $region44: #{tpu_custom_call.1} parent=1 // pred_region
      %102 = dma.done [#allocation3], 2048
    $region45: #{tpu_custom_call.1} parent=1 // pred_fallthru
      _
    // Predicated region
    $region46: #{tpu_custom_call.1} parent=1 // pred_check
      _
    $region47: #{tpu_custom_call.1} parent=1 // pred_check_branch
      %104 = sbr.rel (0) target = $region49
    $region48: #{tpu_custom_call.1} parent=1 // pred_region
      %106 = dma.done [#allocation7], 16384
    $region49: #{tpu_custom_call.1} parent=1 // pred_fallthru
      _
    // Predicated region
    $region50: #{tpu_custom_call.1} parent=1 // pred_check
      _
    $region51: #{tpu_custom_call.1} parent=1 // pred_check_branch
      %108 = sbr.rel (0) target = $region53
    $region52: #{tpu_custom_call.1} parent=1 // pred_region
      %110 = dma.done [#allocation7], 2048
    $region53: #{tpu_custom_call.1} parent=1 // pred_fallthru
      _
    // Predicated region
    $region54: #{tpu_custom_call.1} parent=1 // pred_check
      _
    $region55: #{tpu_custom_call.1} parent=1 // pred_check_branch
      %112 = sbr.rel (0) target = $region57
    $region56: #{tpu_custom_call.1} parent=1 // pred_region
      %114 = dma.done [#allocation10], 2048
    $region57: #{tpu_custom_call.1} parent=1 // pred_fallthru
      _
    // Predicated region
    $region58: #{tpu_custom_call.1} parent=1 // pred_check
      _
    $region59: #{tpu_custom_call.1} parent=1 // pred_check_branch
      %116 = sbr.rel (0) target = $region61
    $region60: #{tpu_custom_call.1} parent=1 // pred_region
      %118 = dma.done [#allocation10], 2048
    $region61: #{tpu_custom_call.1} parent=1 // pred_fallthru
      _
    %v119 = vld [vmem:[#allocation2] sm:$0xff]
    %v120 = vld [vmem:[#allocation2 + $0x8] sm:$0xff]
    %v121 = vld [vmem:[#allocation2 + $0x10] sm:$0xff]
    %v122 = vld [vmem:[#allocation2 + $0x18] sm:$0xff]
    %v123 = vld [vmem:[#allocation2 + $0x20] sm:$0xff]
    %v124 = vld [vmem:[#allocation2 + $0x28] sm:$0xff]
    %v125 = vld [vmem:[#allocation2 + $0x30] sm:$0xff]
    %v126 = vld [vmem:[#allocation2 + $0x38] sm:$0xff]
    %v127 = vld [vmem:[#allocation2 + $0x40] sm:$0xff]
    %v128 = vld [vmem:[#allocation2 + $0x48] sm:$0xff]
    %v129 = vld [vmem:[#allocation2 + $0x50] sm:$0xff]
    %v130 = vld [vmem:[#allocation2 + $0x58] sm:$0xff]
    %v131 = vld [vmem:[#allocation2 + $0x60] sm:$0xff]
    %v132 = vld [vmem:[#allocation2 + $0x68] sm:$0xff]
    %v133 = vld [vmem:[#allocation2 + $0x70] sm:$0xff]
    %v134 = vld [vmem:[#allocation2 + $0x78] sm:$0xff]
    %v135 = vld [vmem:[#allocation6] sm:$0xff]
    %v136 = vld [vmem:[#allocation6 + $0x8] sm:$0xff]
    %v137 = vld [vmem:[#allocation6 + $0x10] sm:$0xff]
    %v138 = vld [vmem:[#allocation6 + $0x18] sm:$0xff]
    %v139 = vld [vmem:[#allocation6 + $0x20] sm:$0xff]
    %v140 = vld [vmem:[#allocation6 + $0x28] sm:$0xff]
    %v141 = vld [vmem:[#allocation6 + $0x30] sm:$0xff]
    %v142 = vld [vmem:[#allocation6 + $0x38] sm:$0xff]
    %v143 = vld [vmem:[#allocation6 + $0x40] sm:$0xff]
    %v144 = vld [vmem:[#allocation6 + $0x48] sm:$0xff]
    %v145 = vld [vmem:[#allocation6 + $0x50] sm:$0xff]
    %v146 = vld [vmem:[#allocation6 + $0x58] sm:$0xff]
    %v147 = vld [vmem:[#allocation6 + $0x60] sm:$0xff]
    %v148 = vld [vmem:[#allocation6 + $0x68] sm:$0xff]
    %v149 = vld [vmem:[#allocation6 + $0x70] sm:$0xff]
    %v150 = vld [vmem:[#allocation6 + $0x78] sm:$0xff]
    %v151 = vld [vmem:[#allocation6 + $0x80] sm:$0xff]
    %v152 = vld [vmem:[#allocation6 + $0x88] sm:$0xff]
    %v153 = vld [vmem:[#allocation6 + $0x90] sm:$0xff]
    %v154 = vld [vmem:[#allocation6 + $0x98] sm:$0xff]
    %v155 = vld [vmem:[#allocation6 + $0xa0] sm:$0xff]
    %v156 = vld [vmem:[#allocation6 + $0xa8] sm:$0xff]
    %v157 = vld [vmem:[#allocation6 + $0xb0] sm:$0xff]
    %v158 = vld [vmem:[#allocation6 + $0xb8] sm:$0xff]
    %v159 = vld [vmem:[#allocation6 + $0xc0] sm:$0xff]
    %v160 = vld [vmem:[#allocation6 + $0xc8] sm:$0xff]
    %v161 = vld [vmem:[#allocation6 + $0xd0] sm:$0xff]
    %v162 = vld [vmem:[#allocation6 + $0xd8] sm:$0xff]
    %v163 = vld [vmem:[#allocation6 + $0xe0] sm:$0xff]
    %v164 = vld [vmem:[#allocation6 + $0xe8] sm:$0xff]
    %v165 = vld [vmem:[#allocation6 + $0xf0] sm:$0xff]
    %v166 = vld [vmem:[#allocation6 + $0xf8] sm:$0xff]
    %v167 = vld [vmem:[#allocation6 + $0x100] sm:$0xff]
    %v168 = vld [vmem:[#allocation6 + $0x108] sm:$0xff]
    %v169 = vld [vmem:[#allocation6 + $0x110] sm:$0xff]
    %v170 = vld [vmem:[#allocation6 + $0x118] sm:$0xff]
    %v171 = vld [vmem:[#allocation6 + $0x120] sm:$0xff]
    %v172 = vld [vmem:[#allocation6 + $0x128] sm:$0xff]
    %v173 = vld [vmem:[#allocation6 + $0x130] sm:$0xff]
    %v174 = vld [vmem:[#allocation6 + $0x138] sm:$0xff]
    %v175 = vld [vmem:[#allocation6 + $0x140] sm:$0xff]
    %v176 = vld [vmem:[#allocation6 + $0x148] sm:$0xff]
    %v177 = vld [vmem:[#allocation6 + $0x150] sm:$0xff]
    %v178 = vld [vmem:[#allocation6 + $0x158] sm:$0xff]
    %v179 = vld [vmem:[#allocation6 + $0x160] sm:$0xff]
    %v180 = vld [vmem:[#allocation6 + $0x168] sm:$0xff]
    %v181 = vld [vmem:[#allocation6 + $0x170] sm:$0xff]
    %v182 = vld [vmem:[#allocation6 + $0x178] sm:$0xff]
    %v183 = vld [vmem:[#allocation6 + $0x180] sm:$0xff]
    %v184 = vld [vmem:[#allocation6 + $0x188] sm:$0xff]
    %v185 = vld [vmem:[#allocation6 + $0x190] sm:$0xff]
    %v186 = vld [vmem:[#allocation6 + $0x198] sm:$0xff]
    %v187 = vld [vmem:[#allocation6 + $0x1a0] sm:$0xff]
    %v188 = vld [vmem:[#allocation6 + $0x1a8] sm:$0xff]
    %v189 = vld [vmem:[#allocation6 + $0x1b0] sm:$0xff]
    %v190 = vld [vmem:[#allocation6 + $0x1b8] sm:$0xff]
    %v191 = vld [vmem:[#allocation6 + $0x1c0] sm:$0xff]
    %v192 = vld [vmem:[#allocation6 + $0x1c8] sm:$0xff]
    %v193 = vld [vmem:[#allocation6 + $0x1d0] sm:$0xff]
    %v194 = vld [vmem:[#allocation6 + $0x1d8] sm:$0xff]
    %v195 = vld [vmem:[#allocation6 + $0x1e0] sm:$0xff]
    %v196 = vld [vmem:[#allocation6 + $0x1e8] sm:$0xff]
    %v197 = vld [vmem:[#allocation6 + $0x1f0] sm:$0xff]
    %v198 = vld [vmem:[#allocation6 + $0x1f8] sm:$0xff]
    %v199 = vld [vmem:[#allocation6 + $0x200] sm:$0xff]
    %v200 = vld [vmem:[#allocation6 + $0x208] sm:$0xff]
    %v201 = vld [vmem:[#allocation6 + $0x210] sm:$0xff]
    %v202 = vld [vmem:[#allocation6 + $0x218] sm:$0xff]
    %v203 = vld [vmem:[#allocation6 + $0x220] sm:$0xff]
    %v204 = vld [vmem:[#allocation6 + $0x228] sm:$0xff]
    %v205 = vld [vmem:[#allocation6 + $0x230] sm:$0xff]
    %v206 = vld [vmem:[#allocation6 + $0x238] sm:$0xff]
    %v207 = vld [vmem:[#allocation6 + $0x240] sm:$0xff]
    %v208 = vld [vmem:[#allocation6 + $0x248] sm:$0xff]
    %v209 = vld [vmem:[#allocation6 + $0x250] sm:$0xff]
    %v210 = vld [vmem:[#allocation6 + $0x258] sm:$0xff]
    %v211 = vld [vmem:[#allocation6 + $0x260] sm:$0xff]
    %v212 = vld [vmem:[#allocation6 + $0x268] sm:$0xff]
    %v213 = vld [vmem:[#allocation6 + $0x270] sm:$0xff]
    %v214 = vld [vmem:[#allocation6 + $0x278] sm:$0xff]
    %v215 = vld [vmem:[#allocation6 + $0x280] sm:$0xff]
    %v216 = vld [vmem:[#allocation6 + $0x288] sm:$0xff]
    %v217 = vld [vmem:[#allocation6 + $0x290] sm:$0xff]
    %v218 = vld [vmem:[#allocation6 + $0x298] sm:$0xff]
    %v219 = vld [vmem:[#allocation6 + $0x2a0] sm:$0xff]
    %v220 = vld [vmem:[#allocation6 + $0x2a8] sm:$0xff]
    %v221 = vld [vmem:[#allocation6 + $0x2b0] sm:$0xff]
    %v222 = vld [vmem:[#allocation6 + $0x2b8] sm:$0xff]
    %v223 = vld [vmem:[#allocation6 + $0x2c0] sm:$0xff]
    %v224 = vld [vmem:[#allocation6 + $0x2c8] sm:$0xff]
    %v225 = vld [vmem:[#allocation6 + $0x2d0] sm:$0xff]
    %v226 = vld [vmem:[#allocation6 + $0x2d8] sm:$0xff]
    %v227 = vld [vmem:[#allocation6 + $0x2e0] sm:$0xff]
    %v228 = vld [vmem:[#allocation6 + $0x2e8] sm:$0xff]
    %v229 = vld [vmem:[#allocation6 + $0x2f0] sm:$0xff]
    %v230 = vld [vmem:[#allocation6 + $0x2f8] sm:$0xff]
    %v231 = vld [vmem:[#allocation6 + $0x300] sm:$0xff]
    %v232 = vld [vmem:[#allocation6 + $0x308] sm:$0xff]
    %v233 = vld [vmem:[#allocation6 + $0x310] sm:$0xff]
    %v234 = vld [vmem:[#allocation6 + $0x318] sm:$0xff]
    %v235 = vld [vmem:[#allocation6 + $0x320] sm:$0xff]
    %v236 = vld [vmem:[#allocation6 + $0x328] sm:$0xff]
    %v237 = vld [vmem:[#allocation6 + $0x330] sm:$0xff]
    %v238 = vld [vmem:[#allocation6 + $0x338] sm:$0xff]
    %v239 = vld [vmem:[#allocation6 + $0x340] sm:$0xff]
    %v240 = vld [vmem:[#allocation6 + $0x348] sm:$0xff]
    %v241 = vld [vmem:[#allocation6 + $0x350] sm:$0xff]
    %v242 = vld [vmem:[#allocation6 + $0x358] sm:$0xff]
    %v243 = vld [vmem:[#allocation6 + $0x360] sm:$0xff]
    %v244 = vld [vmem:[#allocation6 + $0x368] sm:$0xff]
    %v245 = vld [vmem:[#allocation6 + $0x370] sm:$0xff]
    %v246 = vld [vmem:[#allocation6 + $0x378] sm:$0xff]
    %v247 = vld [vmem:[#allocation6 + $0x380] sm:$0xff]
    %v248 = vld [vmem:[#allocation6 + $0x388] sm:$0xff]
    %v249 = vld [vmem:[#allocation6 + $0x390] sm:$0xff]
    %v250 = vld [vmem:[#allocation6 + $0x398] sm:$0xff]
    %v251 = vld [vmem:[#allocation6 + $0x3a0] sm:$0xff]
    %v252 = vld [vmem:[#allocation6 + $0x3a8] sm:$0xff]
    %v253 = vld [vmem:[#allocation6 + $0x3b0] sm:$0xff]
    %v254 = vld [vmem:[#allocation6 + $0x3b8] sm:$0xff]
    %v255 = vld [vmem:[#allocation6 + $0x3c0] sm:$0xff]
    %v256 = vld [vmem:[#allocation6 + $0x3c8] sm:$0xff]
    %v257 = vld [vmem:[#allocation6 + $0x3d0] sm:$0xff]
    %v258 = vld [vmem:[#allocation6 + $0x3d8] sm:$0xff]
    %v259 = vld [vmem:[#allocation6 + $0x3e0] sm:$0xff]
    %v260 = vld [vmem:[#allocation6 + $0x3e8] sm:$0xff]
    %v261 = vld [vmem:[#allocation6 + $0x3f0] sm:$0xff]
    %v262 = vld [vmem:[#allocation6 + $0x3f8] sm:$0xff]
    %263 = vmatpush.msra.mxu0 %v150
    %264 = vmatpush.msra.mxu0 %v149
    %265 = vmatpush.msra.mxu0 %v148
    %266 = vmatpush.msra.mxu0 %v147
    %267 = vmatpush.msra.mxu0 %v146
    %268 = vmatpush.msra.mxu0 %v145
    %269 = vmatpush.msra.mxu0 %v144
    %270 = vmatpush.msra.mxu0 %v143
    %271 = vmatpush.msra.mxu0 %v142
    %272 = vmatpush.msra.mxu0 %v141
    %273 = vmatpush.msra.mxu0 %v140
    %274 = vmatpush.msra.mxu0 %v139
    %275 = vmatpush.msra.mxu0 %v138
    %276 = vmatpush.msra.mxu0 %v137
    %277 = vmatpush.msra.mxu0 %v136
    %278 = vmatpush.msra.mxu0 %v135
    %279 = vmatmul.f32.gmra.mxu0 %v119
    %v280 = vpop.f32.mrf.mxu0
    %v281 = vadd.f32 0.0, %v280
    %282 = vmatmul.f32.gmra.mxu0 %v127
    %v283 = vpop.f32.mrf.mxu0
    %v284 = vadd.f32 0.0, %v283
    %285 = vdwg.mxu0
    %286 = vmatpush.msra.mxu0 %v166
    %287 = vmatpush.msra.mxu0 %v165
    %288 = vmatpush.msra.mxu0 %v164
    %289 = vmatpush.msra.mxu0 %v163
    %290 = vmatpush.msra.mxu0 %v162
    %291 = vmatpush.msra.mxu0 %v161
    %292 = vmatpush.msra.mxu0 %v160
    %293 = vmatpush.msra.mxu0 %v159
    %294 = vmatpush.msra.mxu0 %v158
    %295 = vmatpush.msra.mxu0 %v157
    %296 = vmatpush.msra.mxu0 %v156
    %297 = vmatpush.msra.mxu0 %v155
    %298 = vmatpush.msra.mxu0 %v154
    %299 = vmatpush.msra.mxu0 %v153
    %300 = vmatpush.msra.mxu0 %v152
    %301 = vmatpush.msra.mxu0 %v151
    %302 = vmatmul.f32.gmra.mxu0 %v120
    %v303 = vpop.f32.mrf.mxu0
    %v304 = vadd.f32 %v281, %v303
    %305 = vmatmul.f32.gmra.mxu0 %v128
    %v306 = vpop.f32.mrf.mxu0
    %v307 = vadd.f32 %v284, %v306
    %308 = vdwg.mxu0
    %309 = vmatpush.msra.mxu0 %v182
    %310 = vmatpush.msra.mxu0 %v181
    %311 = vmatpush.msra.mxu0 %v180
    %312 = vmatpush.msra.mxu0 %v179
    %313 = vmatpush.msra.mxu0 %v178
    %314 = vmatpush.msra.mxu0 %v177
    %315 = vmatpush.msra.mxu0 %v176
    %316 = vmatpush.msra.mxu0 %v175
    %317 = vmatpush.msra.mxu0 %v174
    %318 = vmatpush.msra.mxu0 %v173
    %319 = vmatpush.msra.mxu0 %v172
    %320 = vmatpush.msra.mxu0 %v171
    %321 = vmatpush.msra.mxu0 %v170
    %322 = vmatpush.msra.mxu0 %v169
    %323 = vmatpush.msra.mxu0 %v168
    %324 = vmatpush.msra.mxu0 %v167
    %325 = vmatmul.f32.gmra.mxu0 %v121
    %v326 = vpop.f32.mrf.mxu0
    %v327 = vadd.f32 %v304, %v326
    %328 = vmatmul.f32.gmra.mxu0 %v129
    %v329 = vpop.f32.mrf.mxu0
    %v330 = vadd.f32 %v307, %v329
    %331 = vdwg.mxu0
    %332 = vmatpush.msra.mxu0 %v198
    %333 = vmatpush.msra.mxu0 %v197
    %334 = vmatpush.msra.mxu0 %v196
    %335 = vmatpush.msra.mxu0 %v195
    %336 = vmatpush.msra.mxu0 %v194
    %337 = vmatpush.msra.mxu0 %v193
    %338 = vmatpush.msra.mxu0 %v192
    %339 = vmatpush.msra.mxu0 %v191
    %340 = vmatpush.msra.mxu0 %v190
    %341 = vmatpush.msra.mxu0 %v189
    %342 = vmatpush.msra.mxu0 %v188
    %343 = vmatpush.msra.mxu0 %v187
    %344 = vmatpush.msra.mxu0 %v186
    %345 = vmatpush.msra.mxu0 %v185
    %346 = vmatpush.msra.mxu0 %v184
    %347 = vmatpush.msra.mxu0 %v183
    %348 = vmatmul.f32.gmra.mxu0 %v122
    %v349 = vpop.f32.mrf.mxu0
    %v350 = vadd.f32 %v327, %v349
    %351 = vmatmul.f32.gmra.mxu0 %v130
    %v352 = vpop.f32.mrf.mxu0
    %v353 = vadd.f32 %v330, %v352
    %354 = vdwg.mxu0
    %355 = vmatpush.msra.mxu0 %v214
    %356 = vmatpush.msra.mxu0 %v213
    %357 = vmatpush.msra.mxu0 %v212
    %358 = vmatpush.msra.mxu0 %v211
    %359 = vmatpush.msra.mxu0 %v210
    %360 = vmatpush.msra.mxu0 %v209
    %361 = vmatpush.msra.mxu0 %v208
    %362 = vmatpush.msra.mxu0 %v207
    %363 = vmatpush.msra.mxu0 %v206
    %364 = vmatpush.msra.mxu0 %v205
    %365 = vmatpush.msra.mxu0 %v204
    %366 = vmatpush.msra.mxu0 %v203
    %367 = vmatpush.msra.mxu0 %v202
    %368 = vmatpush.msra.mxu0 %v201
    %369 = vmatpush.msra.mxu0 %v200
    %370 = vmatpush.msra.mxu0 %v199
    %371 = vmatmul.f32.gmra.mxu0 %v123
    %v372 = vpop.f32.mrf.mxu0
    %v373 = vadd.f32 %v350, %v372
    %374 = vmatmul.f32.gmra.mxu0 %v131
    %v375 = vpop.f32.mrf.mxu0
    %v376 = vadd.f32 %v353, %v375
    %377 = vdwg.mxu0
    %378 = vmatpush.msra.mxu0 %v230
    %379 = vmatpush.msra.mxu0 %v229
    %380 = vmatpush.msra.mxu0 %v228
    %381 = vmatpush.msra.mxu0 %v227
    %382 = vmatpush.msra.mxu0 %v226
    %383 = vmatpush.msra.mxu0 %v225
    %384 = vmatpush.msra.mxu0 %v224
    %385 = vmatpush.msra.mxu0 %v223
    %386 = vmatpush.msra.mxu0 %v222
    %387 = vmatpush.msra.mxu0 %v221
    %388 = vmatpush.msra.mxu0 %v220
    %389 = vmatpush.msra.mxu0 %v219
    %390 = vmatpush.msra.mxu0 %v218
    %391 = vmatpush.msra.mxu0 %v217
    %392 = vmatpush.msra.mxu0 %v216
    %393 = vmatpush.msra.mxu0 %v215
    %394 = vmatmul.f32.gmra.mxu0 %v124
    %v395 = vpop.f32.mrf.mxu0
    %v396 = vadd.f32 %v373, %v395
    %397 = vmatmul.f32.gmra.mxu0 %v132
    %v398 = vpop.f32.mrf.mxu0
    %v399 = vadd.f32 %v376, %v398
    %400 = vdwg.mxu0
    %401 = vmatpush.msra.mxu0 %v246
    %402 = vmatpush.msra.mxu0 %v245
    %403 = vmatpush.msra.mxu0 %v244
    %404 = vmatpush.msra.mxu0 %v243
    %405 = vmatpush.msra.mxu0 %v242
    %406 = vmatpush.msra.mxu0 %v241
    %407 = vmatpush.msra.mxu0 %v240
    %408 = vmatpush.msra.mxu0 %v239
    %409 = vmatpush.msra.mxu0 %v238
    %410 = vmatpush.msra.mxu0 %v237
    %411 = vmatpush.msra.mxu0 %v236
    %412 = vmatpush.msra.mxu0 %v235
    %413 = vmatpush.msra.mxu0 %v234
    %414 = vmatpush.msra.mxu0 %v233
    %415 = vmatpush.msra.mxu0 %v232
    %416 = vmatpush.msra.mxu0 %v231
    %417 = vmatmul.f32.gmra.mxu0 %v125
    %v418 = vpop.f32.mrf.mxu0
    %v419 = vadd.f32 %v396, %v418
    %420 = vmatmul.f32.gmra.mxu0 %v133
    %v421 = vpop.f32.mrf.mxu0
    %v422 = vadd.f32 %v399, %v421
    %423 = vdwg.mxu0
    %424 = vmatpush.msra.mxu0 %v262
    %425 = vmatpush.msra.mxu0 %v261
    %426 = vmatpush.msra.mxu0 %v260
    %427 = vmatpush.msra.mxu0 %v259
    %428 = vmatpush.msra.mxu0 %v258
    %429 = vmatpush.msra.mxu0 %v257
    %430 = vmatpush.msra.mxu0 %v256
    %431 = vmatpush.msra.mxu0 %v255
    %432 = vmatpush.msra.mxu0 %v254
    %433 = vmatpush.msra.mxu0 %v253
    %434 = vmatpush.msra.mxu0 %v252
    %435 = vmatpush.msra.mxu0 %v251
    %436 = vmatpush.msra.mxu0 %v250
    %437 = vmatpush.msra.mxu0 %v249
    %438 = vmatpush.msra.mxu0 %v248
    %439 = vmatpush.msra.mxu0 %v247
    %440 = vmatmul.f32.gmra.mxu0 %v126
    %v441 = vpop.f32.mrf.mxu0
    %v442 = vadd.f32 %v419, %v441
    %443 = vmatmul.f32.gmra.mxu0 %v134
    %v444 = vpop.f32.mrf.mxu0
    %v445 = vadd.f32 %v422, %v444
    %446 = vdwg.mxu0
    %447 = vst [vmem:[#allocation13] sm:$0xff] %v442
    %448 = vst [vmem:[#allocation13 + $0x8] sm:$0xff] %v445
    %v449 = vld [vmem:[#allocation8] sm:$0xff]
    %v450 = vld [vmem:[#allocation8 + $0x8] sm:$0xff]
    %v451 = vld [vmem:[#allocation8 + $0x10] sm:$0xff]
    %v452 = vld [vmem:[#allocation8 + $0x18] sm:$0xff]
    %v453 = vld [vmem:[#allocation8 + $0x20] sm:$0xff]
    %v454 = vld [vmem:[#allocation8 + $0x28] sm:$0xff]
    %v455 = vld [vmem:[#allocation8 + $0x30] sm:$0xff]
    %v456 = vld [vmem:[#allocation8 + $0x38] sm:$0xff]
    %v457 = vld [vmem:[#allocation8 + $0x40] sm:$0xff]
    %v458 = vld [vmem:[#allocation8 + $0x48] sm:$0xff]
    %v459 = vld [vmem:[#allocation8 + $0x50] sm:$0xff]
    %v460 = vld [vmem:[#allocation8 + $0x58] sm:$0xff]
    %v461 = vld [vmem:[#allocation8 + $0x60] sm:$0xff]
    %v462 = vld [vmem:[#allocation8 + $0x68] sm:$0xff]
    %v463 = vld [vmem:[#allocation8 + $0x70] sm:$0xff]
    %v464 = vld [vmem:[#allocation8 + $0x78] sm:$0xff]
    %465 = vmatpush.msra.mxu0 %v464
    %466 = vmatpush.msra.mxu0 %v463
    %467 = vmatpush.msra.mxu0 %v462
    %468 = vmatpush.msra.mxu0 %v461
    %469 = vmatpush.msra.mxu0 %v460
    %470 = vmatpush.msra.mxu0 %v459
    %471 = vmatpush.msra.mxu0 %v458
    %472 = vmatpush.msra.mxu0 %v457
    %473 = vmatpush.msra.mxu0 %v456
    %474 = vmatpush.msra.mxu0 %v455
    %475 = vmatpush.msra.mxu0 %v454
    %476 = vmatpush.msra.mxu0 %v453
    %477 = vmatpush.msra.mxu0 %v452
    %478 = vmatpush.msra.mxu0 %v451
    %479 = vmatpush.msra.mxu0 %v450
    %480 = vmatpush.msra.mxu0 %v449
    %481 = vmatmul.f32.gmra.mxu0 %v442
    %v482 = vpop.f32.mrf.mxu0
    %v483 = vadd.f32 0.0, %v482
    %484 = vmatmul.f32.gmra.mxu0 %v445
    %v485 = vpop.f32.mrf.mxu0
    %v486 = vadd.f32 0.0, %v485
    %487 = vdwg.mxu0
    %v488 = vld [vmem:[%s3] sm:$0x1]
    %v489 = vld [vmem:[%s4] sm:$0x1]
    %v490 = vrot.slane %v483, 4
    %v491 = vadd.f32 %v483, %v490
    %v492 = vrot.slane %v491, 2
    %v493 = vadd.f32 %v491, %v492
    %v494 = vrot.slane %v493, 1
    %v495 = vadd.f32 %v493, %v494
    %v496 = vrot.slane %v486, 4
    %v497 = vadd.f32 %v486, %v496
    %v498 = vrot.slane %v497, 2
    %v499 = vadd.f32 %v497, %v498
    %v500 = vrot.slane %v499, 1
    %v501 = vadd.f32 %v499, %v500
    %v502 = vrcp.pop 8.0
    %v503 = vmul.f32 8.0, %v502
    %v504 = vsub.f32 1.0, %v503
    %v505 = vmul.f32 %v502, %v504
    %v506 = vadd.f32 %v502, %v505
    %vm507 = vweird.f32 %v502
    %v508 = vsel %vm507, %v502, %v506
    %v509 = vmul.f32 %v495, %v508
    %v510 = vmul.f32 %v501, %v508
    %v511 = vsub.f32 %v483, %v509
    %v512 = vsub.f32 %v486, %v510
    %v513 = vmul.f32 %v511, %v511
    %v514 = vmul.f32 %v512, %v512
    %v515 = vrot.slane %v513, 4
    %v516 = vadd.f32 %v513, %v515
    %v517 = vrot.slane %v516, 2
    %v518 = vadd.f32 %v516, %v517
    %v519 = vrot.slane %v518, 1
    %v520 = vadd.f32 %v518, %v519
    %v521 = vrot.slane %v514, 4
    %v522 = vadd.f32 %v514, %v521
    %v523 = vrot.slane %v522, 2
    %v524 = vadd.f32 %v522, %v523
    %v525 = vrot.slane %v524, 1
    %v526 = vadd.f32 %v524, %v525
    %v527 = vmul.f32 %v520, %v508
    %v528 = vmul.f32 %v526, %v508
    %v529 = vadd.f32 %v527, 1e-05
    %v530 = vadd.f32 %v528, 1e-05
    %v531 = vrsqrt.pop %v529
    %v532 = vmul.f32 %v531, %v529
    %v533 = vmul.f32 %v532, %v531
    %v534 = vmul.f32 0.5, %v533
    %v535 = vsub.f32 1.5, %v534
    %v536 = vmul.f32 %v531, %v535
    %vm537 = vweird.f32 %v529
    %vm538 = vweird.f32 %v531
    %vm539 = vmor %vm537, %vm538
    %v540 = vsel %vm539, %v531, %v536
    %v541 = vrsqrt.pop %v530
    %v542 = vmul.f32 %v541, %v530
    %v543 = vmul.f32 %v542, %v541
    %v544 = vmul.f32 0.5, %v543
    %v545 = vsub.f32 1.5, %v544
    %v546 = vmul.f32 %v541, %v545
    %vm547 = vweird.f32 %v530
    %vm548 = vweird.f32 %v541
    %vm549 = vmor %vm547, %vm548
    %v550 = vsel %vm549, %v541, %v546
    %v551 = vmul.f32 %v540, %v488
    %v552 = vmul.f32 %v550, %v488
    %v553 = vperm.slane %v551, 0
    %v554 = vperm.slane %v552, 0
    %v555 = vmul.f32 %v511, %v553
    %v556 = vmul.f32 %v512, %v554
    %v558 = vperm.slane %v489, 0
    %v560 = vadd.f32 %v555, %v558
    %v561 = vadd.f32 %v556, %v558
    %v562 = vmax.f32 %v560, 0.0
    %v563 = vmax.f32 %v561, 0.0
    %v564 = vld [vmem:[#allocation9] sm:$0xff]
    %v565 = vld [vmem:[#allocation9 + $0x8] sm:$0xff]
    %v566 = vld [vmem:[#allocation9 + $0x10] sm:$0xff]
    %v567 = vld [vmem:[#allocation9 + $0x18] sm:$0xff]
    %v568 = vld [vmem:[#allocation9 + $0x20] sm:$0xff]
    %v569 = vld [vmem:[#allocation9 + $0x28] sm:$0xff]
    %v570 = vld [vmem:[#allocation9 + $0x30] sm:$0xff]
    %v571 = vld [vmem:[#allocation9 + $0x38] sm:$0xff]
    %v572 = vld [vmem:[#allocation9 + $0x40] sm:$0xff]
    %v573 = vld [vmem:[#allocation9 + $0x48] sm:$0xff]
    %v574 = vld [vmem:[#allocation9 + $0x50] sm:$0xff]
    %v575 = vld [vmem:[#allocation9 + $0x58] sm:$0xff]
    %v576 = vld [vmem:[#allocation9 + $0x60] sm:$0xff]
    %v577 = vld [vmem:[#allocation9 + $0x68] sm:$0xff]
    %v578 = vld [vmem:[#allocation9 + $0x70] sm:$0xff]
    %v579 = vld [vmem:[#allocation9 + $0x78] sm:$0xff]
    %580 = vmatpush.msra.mxu0 %v579
    %581 = vmatpush.msra.mxu0 %v578
    %582 = vmatpush.msra.mxu0 %v577
    %583 = vmatpush.msra.mxu0 %v576
    %584 = vmatpush.msra.mxu0 %v575
    %585 = vmatpush.msra.mxu0 %v574
    %586 = vmatpush.msra.mxu0 %v573
    %587 = vmatpush.msra.mxu0 %v572
    %588 = vmatpush.msra.mxu0 %v571
    %589 = vmatpush.msra.mxu0 %v570
    %590 = vmatpush.msra.mxu0 %v569
    %591 = vmatpush.msra.mxu0 %v568
    %592 = vmatpush.msra.mxu0 %v567
    %593 = vmatpush.msra.mxu0 %v566
    %594 = vmatpush.msra.mxu0 %v565
    %595 = vmatpush.msra.mxu0 %v564
    %596 = vmatmul.f32.gmra.mxu0 %v562
    %v597 = vpop.f32.mrf.mxu0
    %v598 = vadd.f32 0.0, %v597
    %599 = vmatmul.f32.gmra.mxu0 %v563
    %v600 = vpop.f32.mrf.mxu0
    %v601 = vadd.f32 0.0, %v600
    %602 = vdwg.mxu0
    %v603 = vld [vmem:[%s6] sm:$0x1]
    %v604 = vld [vmem:[%s7] sm:$0x1]
    %v605 = vrot.slane %v598, 4
    %v606 = vadd.f32 %v598, %v605
    %v607 = vrot.slane %v606, 2
    %v608 = vadd.f32 %v606, %v607
    %v609 = vrot.slane %v608, 1
    %v610 = vadd.f32 %v608, %v609
    %v611 = vrot.slane %v601, 4
    %v612 = vadd.f32 %v601, %v611
    %v613 = vrot.slane %v612, 2
    %v614 = vadd.f32 %v612, %v613
    %v615 = vrot.slane %v614, 1
    %v616 = vadd.f32 %v614, %v615
    %v617 = vmul.f32 %v610, %v508
    %v618 = vmul.f32 %v616, %v508
    %v619 = vsub.f32 %v598, %v617
    %v620 = vsub.f32 %v601, %v618
    %v621 = vmul.f32 %v619, %v619
    %v622 = vmul.f32 %v620, %v620
    %v623 = vrot.slane %v621, 4
    %v624 = vadd.f32 %v621, %v623
    %v625 = vrot.slane %v624, 2
    %v626 = vadd.f32 %v624, %v625
    %v627 = vrot.slane %v626, 1
    %v628 = vadd.f32 %v626, %v627
    %v629 = vrot.slane %v622, 4
    %v630 = vadd.f32 %v622, %v629
    %v631 = vrot.slane %v630, 2
    %v632 = vadd.f32 %v630, %v631
    %v633 = vrot.slane %v632, 1
    %v634 = vadd.f32 %v632, %v633
    %v635 = vmul.f32 %v628, %v508
    %v636 = vmul.f32 %v634, %v508
    %v637 = vadd.f32 %v635, 1e-05
    %v638 = vadd.f32 %v636, 1e-05
    %v639 = vrsqrt.pop %v637
    %v640 = vmul.f32 %v639, %v637
    %v641 = vmul.f32 %v640, %v639
    %v642 = vmul.f32 0.5, %v641
    %v643 = vsub.f32 1.5, %v642
    %v644 = vmul.f32 %v639, %v643
    %vm645 = vweird.f32 %v637
    %vm646 = vweird.f32 %v639
    %vm647 = vmor %vm645, %vm646
    %v648 = vsel %vm647, %v639, %v644
    %v649 = vrsqrt.pop %v638
    %v650 = vmul.f32 %v649, %v638
    %v651 = vmul.f32 %v650, %v649
    %v652 = vmul.f32 0.5, %v651
    %v653 = vsub.f32 1.5, %v652
    %v654 = vmul.f32 %v649, %v653
    %vm655 = vweird.f32 %v638
    %vm656 = vweird.f32 %v649
    %vm657 = vmor %vm655, %vm656
    %v658 = vsel %vm657, %v649, %v654
    %v659 = vmul.f32 %v648, %v603
    %v660 = vmul.f32 %v658, %v603
    %v661 = vperm.slane %v659, 0
    %v662 = vperm.slane %v660, 0
    %v663 = vmul.f32 %v619, %v661
    %v664 = vmul.f32 %v620, %v662
    %v666 = vperm.slane %v604, 0
    %v668 = vadd.f32 %v663, %v666
    %v669 = vadd.f32 %v664, %v666
    %v670 = vmax.f32 %v668, 0.0
    %v671 = vmax.f32 %v669, 0.0
    %v672 = vld [vmem:[#allocation11] sm:$0xff]
    %v673 = vld [vmem:[#allocation11 + $0x8] sm:$0xff]
    %v674 = vld [vmem:[#allocation11 + $0x10] sm:$0xff]
    %v675 = vld [vmem:[#allocation11 + $0x18] sm:$0xff]
    %v676 = vld [vmem:[#allocation11 + $0x20] sm:$0xff]
    %v677 = vld [vmem:[#allocation11 + $0x28] sm:$0xff]
    %v678 = vld [vmem:[#allocation11 + $0x30] sm:$0xff]
    %v679 = vld [vmem:[#allocation11 + $0x38] sm:$0xff]
    %v680 = vld [vmem:[#allocation11 + $0x40] sm:$0xff]
    %v681 = vld [vmem:[#allocation11 + $0x48] sm:$0xff]
    %v682 = vld [vmem:[#allocation11 + $0x50] sm:$0xff]
    %v683 = vld [vmem:[#allocation11 + $0x58] sm:$0xff]
    %v684 = vld [vmem:[#allocation11 + $0x60] sm:$0xff]
    %v685 = vld [vmem:[#allocation11 + $0x68] sm:$0xff]
    %v686 = vld [vmem:[#allocation11 + $0x70] sm:$0xff]
    %v687 = vld [vmem:[#allocation11 + $0x78] sm:$0xff]
    %v688 = vld [vmem:[%s9] sm:$0x1]
    %v690 = vperm.slane %v688, 0
    %692 = vmatpush.msra.mxu0 %v687
    %693 = vmatpush.msra.mxu0 %v686
    %694 = vmatpush.msra.mxu0 %v685
    %695 = vmatpush.msra.mxu0 %v684
    %696 = vmatpush.msra.mxu0 %v683
    %697 = vmatpush.msra.mxu0 %v682
    %698 = vmatpush.msra.mxu0 %v681
    %699 = vmatpush.msra.mxu0 %v680
    %700 = vmatpush.msra.mxu0 %v679
    %701 = vmatpush.msra.mxu0 %v678
    %702 = vmatpush.msra.mxu0 %v677
    %703 = vmatpush.msra.mxu0 %v676
    %704 = vmatpush.msra.mxu0 %v675
    %705 = vmatpush.msra.mxu0 %v674
    %706 = vmatpush.msra.mxu0 %v673
    %707 = vmatpush.msra.mxu0 %v672
    %708 = vmatmul.f32.gmra.mxu0 %v670
    %v709 = vpop.f32.mrf.mxu0
    %v710 = vadd.f32 %v690, %v709
    %711 = vmatmul.f32.gmra.mxu0 %v671
    %v712 = vpop.f32.mrf.mxu0
    %v713 = vadd.f32 %v690, %v712
    %714 = vdwg.mxu0
    %v715 = vrot.slane %v710, 4
    %v716 = vadd.f32 %v710, %v715
    %v717 = vrot.slane %v716, 2
    %v718 = vadd.f32 %v716, %v717
    %v719 = vrot.slane %v718, 1
    %v720 = vadd.f32 %v718, %v719
    %v721 = vrot.slane %v713, 4
    %v722 = vadd.f32 %v713, %v721
    %v723 = vrot.slane %v722, 2
    %v724 = vadd.f32 %v722, %v723
    %v725 = vrot.slane %v724, 1
    %v726 = vadd.f32 %v724, %v725
    %v727 = vmul.f32 %v720, %v508
    %v728 = vmul.f32 %v726, %v508
    %v729 = vsub.f32 %v710, %v727
    %v730 = vsub.f32 %v713, %v728
    %v731 = vmul.f32 %v729, %v729
    %v732 = vmul.f32 %v730, %v730
    %v733 = vrot.slane %v731, 4
    %v734 = vadd.f32 %v731, %v733
    %v735 = vrot.slane %v734, 2
    %v736 = vadd.f32 %v734, %v735
    %v737 = vrot.slane %v736, 1
    %v738 = vadd.f32 %v736, %v737
    %v739 = vrot.slane %v732, 4
    %v740 = vadd.f32 %v732, %v739
    %v741 = vrot.slane %v740, 2
    %v742 = vadd.f32 %v740, %v741
    %v743 = vrot.slane %v742, 1
    %v744 = vadd.f32 %v742, %v743
    %v745 = vmul.f32 %v738, %v508
    %v746 = vmul.f32 %v744, %v508
    %v747 = vadd.f32 %v745, 1e-05
    %v748 = vadd.f32 %v746, 1e-05
    %v749 = vrsqrt.pop %v747
    %v750 = vmul.f32 %v749, %v747
    %v751 = vmul.f32 %v750, %v749
    %v752 = vmul.f32 0.5, %v751
    %v753 = vsub.f32 1.5, %v752
    %v754 = vmul.f32 %v749, %v753
    %vm755 = vweird.f32 %v747
    %vm756 = vweird.f32 %v749
    %vm757 = vmor %vm755, %vm756
    %v758 = vsel %vm757, %v749, %v754
    %v759 = vrsqrt.pop %v748
    %v760 = vmul.f32 %v759, %v748
    %v761 = vmul.f32 %v760, %v759
    %v762 = vmul.f32 0.5, %v761
    %v763 = vsub.f32 1.5, %v762
    %v764 = vmul.f32 %v759, %v763
    %vm765 = vweird.f32 %v748
    %vm766 = vweird.f32 %v759
    %vm767 = vmor %vm765, %vm766
    %v768 = vsel %vm767, %v759, %v764
    %v769 = vmul.f32 %v729, %v758
    %v770 = vmul.f32 %v730, %v768
    %771 = vst [vmem:[#allocation14] sm:$0xff] %v769
    %772 = vst [vmem:[#allocation14 + $0x8] sm:$0xff] %v770
    %v773 = vmul.f32 %v769, %v769
    %v774 = vmul.f32 %v770, %v770
    %775 = vadd.xlane.f32.xlu0 %v773
    %v776 = vpop.xlane.xlu0 %775
    %777 = vadd.xlane.f32.xlu0 %v774
    %v778 = vpop.xlane.xlu0 %777
    %v779 = vmax.f32 %v776, 1e-24
    %v780 = vmax.f32 %v778, 1e-24
    %v781 = vrsqrt.pop %v779
    %v782 = vmul.f32 %v781, %v779
    %v783 = vmul.f32 %v782, %v781
    %v784 = vmul.f32 0.5, %v783
    %v785 = vsub.f32 1.5, %v784
    %v786 = vmul.f32 %v781, %v785
    %vm787 = vweird.f32 %v779
    %vm788 = vweird.f32 %v781
    %vm789 = vmor %vm787, %vm788
    %v790 = vsel %vm789, %v781, %v786
    %v791 = vrsqrt.pop %v780
    %v792 = vmul.f32 %v791, %v780
    %v793 = vmul.f32 %v792, %v791
    %v794 = vmul.f32 0.5, %v793
    %v795 = vsub.f32 1.5, %v794
    %v796 = vmul.f32 %v791, %v795
    %vm797 = vweird.f32 %v780
    %vm798 = vweird.f32 %v791
    %vm799 = vmor %vm797, %vm798
    %v800 = vsel %vm799, %v791, %v796
    %v801 = vmul.f32 %v769, %v790
    %v802 = vmul.f32 %v770, %v800
    %803 = vmatpush.xpose.msra.mxu0 0.0
    %804 = vmatpush.xpose.msra.mxu0 0.0
    %805 = vmatpush.xpose.msra.mxu0 0.0
    %806 = vmatpush.xpose.msra.mxu0 0.0
    %807 = vmatpush.xpose.msra.mxu0 0.0
    %808 = vmatpush.xpose.msra.mxu0 0.0
    %809 = vmatpush.xpose.msra.mxu0 0.0
    %810 = vmatpush.xpose.msra.mxu0 0.0
    %811 = vmatpush.xpose.msra.mxu0 0.0
    %812 = vmatpush.xpose.msra.mxu0 0.0
    %813 = vmatpush.xpose.msra.mxu0 0.0
    %814 = vmatpush.xpose.msra.mxu0 0.0
    %815 = vmatpush.xpose.msra.mxu0 0.0
    %816 = vmatpush.xpose.msra.mxu0 0.0
    %817 = vmatpush.xpose.msra.mxu0 %v802
    %818 = vmatpush.xpose.msra.mxu0 %v801
    %819 = vmatmul.f32.gmra.mxu0 %v801
    %v820 = vpop.f32.mrf.mxu0
    %v821 = vadd.f32 0.0, %v820
    %822 = vmatmul.f32.gmra.mxu0 %v802
    %v823 = vpop.f32.mrf.mxu0
    %v824 = vadd.f32 0.0, %v823
    %825 = vdwg.mxu0
    %v826 = vmul.f32 %v821, 2.0
    %v827 = vmul.f32 %v824, 2.0
    %v828 = vmul.f32 %v826, 1.442695
    %v829 = vpow.pop %v828
    %v830 = vmul.f32 %v827, 1.442695
    %v831 = vpow.pop %v830
    %vm832 = vcmask 130048
    %v833 = vsel %vm832, %v829, 0.0
    %834 = vadd.xlane.f32.xlu0 %v833
    %v835 = vpop.xlane.xlu0 %834
    %v836 = vsel %vm832, %v831, 0.0
    %837 = vadd.xlane.f32.xlu0 %v836
    %v838 = vpop.xlane.xlu0 %837
    %v839 = vsub.f32 %v835, 7.389056
    %v840 = vsub.f32 %v838, 7.389056
    %v841 = vmul.f32 %v801, %v802
    %842 = vadd.xlane.f32.xlu0 %v841
    %v843 = vpop.xlane.xlu0 %842
    %v844 = vlog2.pop %v839
    %v845 = vmul.f32 %v844, 0.6931472
    %v846 = vlog2.pop %v840
    %v847 = vmul.f32 %v846, 0.6931472
    %vm848 = vcmask 7168
    %v849 = vsel %vm848, %v845, 0.0
    %v850 = vsel %vm848, %v847, 0.0
    %v851 = vadd.f32 %v849, %v850
    %852 = vadd.xlane.f32.xlu0 %v851
    %v853 = vpop.xlane.xlu0 %852
    %v854 = vrot.slane %v853, 4
    %v855 = vadd.f32 %v853, %v854
    %v856 = vrot.slane %v855, 2
    %v857 = vadd.f32 %v855, %v856
    %v858 = vrot.slane %v857, 1
    %v859 = vadd.f32 %v857, %v858
    %s860 = vtos %v859
    %v861 = vrcp.pop 16.0
    %v862 = vmul.f32 16.0, %v861
    %v863 = vsub.f32 1.0, %v862
    %v864 = vmul.f32 %v861, %v863
    %v865 = vadd.f32 %v861, %v864
    %vm866 = vweird.f32 %v861
    %v867 = vsel %vm866, %v861, %v865
    %s868 = vtos %v867
    %s869 = smul.f32 %s860, %s868
    %v870 = vsel %vm848, %v843, 0.0
    %871 = vadd.xlane.f32.xlu0 %v870
    %v872 = vpop.xlane.xlu0 %871
    %v873 = vrot.slane %v872, 4
    %v874 = vadd.f32 %v872, %v873
    %v875 = vrot.slane %v874, 2
    %v876 = vadd.f32 %v874, %v875
    %v877 = vrot.slane %v876, 1
    %v878 = vadd.f32 %v876, %v877
    %s879 = vtos %v878
    %v880 = vrcp.pop 8.0
    %v881 = vmul.f32 8.0, %v880
    %v882 = vsub.f32 1.0, %v881
    %v883 = vmul.f32 %v880, %v882
    %v884 = vadd.f32 %v880, %v883
    %vm885 = vweird.f32 %v880
    %v886 = vsel %vm885, %v880, %v884
    %s887 = vtos %v886
    %s888 = smul.f32 %s879, %s887
    %s889 = smul.f32 %s888, 2.0
    %s890 = ssub.f32 %s869, %s889
    %s891 = scalar_lea.smem [#allocation12], 0
    %892 = sst [smem:[%s891]] %s890
    // Predicated region
    $region62: #{tpu_custom_call.1} parent=1 // pred_check
      _
    $region63: #{tpu_custom_call.1} parent=1 // pred_check_branch
      %894 = sbr.rel (0) target = $region65
    $region64: #{tpu_custom_call.1} parent=1 // pred_region
      %896 = vsyncadd [#allocation5], 0
      %s898 = sshll.u32 %s10, 4
      %s899 = int_to_ptr.hbm [resolvable:$true] %s898
      %901 = dma.smem_to_hbm [#allocation12], 16, %s899, [#allocation5]
    $region65: #{tpu_custom_call.1} parent=1 // pred_fallthru
      _
    // Predicated region
    $region66: #{tpu_custom_call.1} parent=1 // pred_check
      _
    $region67: #{tpu_custom_call.1} parent=1 // pred_check_branch
      %903 = sbr.rel (0) target = $region69
    $region68: #{tpu_custom_call.1} parent=1 // pred_region
      %905 = vsyncadd [#allocation4], 0
      %s906 = sshll.u32 [#allocation13], 4
      %s907 = int_to_ptr.vmem [resolvable:$true] %s906
      %s908 = sshll.u32 %s11, 4
      %s909 = int_to_ptr.hbm [resolvable:$true] %s908
      %914 = dma.vmem_to_hbm [thread:$0]  %s907, 256, %s909, [#allocation4], 128, 128, 8
    $region69: #{tpu_custom_call.1} parent=1 // pred_fallthru
      _
    // Predicated region
    $region70: #{tpu_custom_call.1} parent=1 // pred_check
      _
    $region71: #{tpu_custom_call.1} parent=1 // pred_check_branch
      %916 = sbr.rel (0) target = $region73
    $region72: #{tpu_custom_call.1} parent=1 // pred_region
      %918 = vsyncadd [#allocation15], 0
      %s919 = sshll.u32 [#allocation14], 4
      %s920 = int_to_ptr.vmem [resolvable:$true] %s919
      %s921 = sshll.u32 %s12, 4
      %s922 = int_to_ptr.hbm [resolvable:$true] %s921
      %927 = dma.vmem_to_hbm [thread:$0]  %s920, 256, %s922, [#allocation15], 128, 128, 8
    $region73: #{tpu_custom_call.1} parent=1 // pred_fallthru
      _
    // Predicated region
    $region74: #{tpu_custom_call.1} parent=1 // pred_check
      _
    $region75: #{tpu_custom_call.1} parent=1 // pred_check_branch
      %929 = sbr.rel (0) target = $region77
    $region76: #{tpu_custom_call.1} parent=1 // pred_region
      %931 = dma.done [#allocation5], 16
    $region77: #{tpu_custom_call.1} parent=1 // pred_fallthru
      _
    // Predicated region
    $region78: #{tpu_custom_call.1} parent=1 // pred_check
      _
    $region79: #{tpu_custom_call.1} parent=1 // pred_check_branch
      %933 = sbr.rel (0) target = $region81
    $region80: #{tpu_custom_call.1} parent=1 // pred_region
      %935 = dma.done [#allocation4], 256
    $region81: #{tpu_custom_call.1} parent=1 // pred_fallthru
      _
    // Predicated region
    $region82: #{tpu_custom_call.1} parent=1 // pred_check
      _
    $region83: #{tpu_custom_call.1} parent=1 // pred_check_branch
      %937 = sbr.rel (0) target = $region85
    $region84: #{tpu_custom_call.1} parent=1 // pred_region
      %939 = dma.done [#allocation15], 256
    $region85: #{tpu_custom_call.1} parent=1 // pred_fallthru
      _
    %940 = sfence
    %941 = vsyncpa [#allocation3], 1
    %942 = vsyncpa [#allocation7], 1
    %943 = vsyncpa [#allocation10], 1
    %944 = vsyncpa [#allocation4], 1
    %945 = vsyncpa [#allocation15], 1
    %946 = vsyncpa [#allocation5], 1

</llo_original>
